<compile_context>
chip_gen: v7x
topology: tpu7x:2x2x1
jax: 0.10.0
libtpu: 0.0.40
codegen_flags: <defaults>
</compile_context>

<pallas_src>
import math

import jax
import jax.numpy as jnp
from jax.experimental import pallas as pl
from jax.experimental.pallas import tpu as pltpu

W_WING = 10.0
EPSILON = 2.0
C_WING = W_WING - W_WING * math.log(1.0 + W_WING / EPSILON)
INV_EPS = 1.0 / EPSILON


# ----------------------------- Pallas kernel --------------------------------

def wing_kernel(a_ref, basis_ref, out_ref):
    A = a_ref[0]            # (TB*3, Kpad)  fused (pose x alpha, offset) diff rows
    B = basis_ref[...]      # (Kpad, Vpad)  fused [w_shp | w_exp | u | ones] basis

    # Single MXU matmul -> vertex_pred - vertex_gt for all coords of the tile.
    x = jnp.dot(A, B, preferred_element_type=jnp.float32)     # (TB*3, Vpad)

    ax = jnp.abs(x)
    wing = jnp.where(ax < W_WING,
                     W_WING * jnp.log(1.0 + ax * INV_EPS),
                     ax - C_WING)

    # Sublane-group fold to (8, Vpad): pure VPU adds, no cross-lane reduce.
    # (TB*3 is a multiple of 8, Vpad a multiple of 128 -> tile-aligned reshape.)
    out_ref[0] = jnp.sum(wing.reshape(-1, 8, wing.shape[-1]), axis=0)


def wing_loss_pallas(p, pg, off, offg, ashp, ashpg, aexp, aexpg,
                     u_base, w_shp_base, w_exp_base):
    """Fused 3DMM reconstruction-difference + wing-loss mean."""
    N = p.shape[0]
    K3, n_shp = w_shp_base.shape
    n_exp = w_exp_base.shape[1]
    V = K3 // 3
    F = n_shp + n_exp + 1                      # shape + expr + constant-1 (mean u)
    Kc = 3 * F + 1                             # 3 model coords x F, + offset row
    Kpad = ((Kc + 7) // 8) * 8
    Vpad = ((V + 127) // 128) * 128

    # --- fused basis B[j*F+f, v] = basis[f, j, v]; last row = ones on valid lanes
    wshp_vjf = w_shp_base.reshape(V, 3, n_shp)                    # [v, j, f]
    wexp_vjf = w_exp_base.reshape(V, 3, n_exp)
    u_vj1 = u_base.reshape(V, 3, 1)
    basis_vjf = jnp.concatenate([wshp_vjf, wexp_vjf, u_vj1], axis=2)   # (V, 3, F)
    B2 = basis_vjf.transpose(1, 2, 0).reshape(3 * F, V)                # (3F, V)
    B2 = jnp.concatenate([B2, jnp.ones((1, V), jnp.float32)], axis=0)  # (Kc, V)
    B2 = jnp.pad(B2, ((0, Kpad - Kc), (0, Vpad - V))).astype(jnp.float32)

    # --- fused A rows: pose x alpha outer product, pred-gt difference folded in
    ones = jnp.ones((N, 1), jnp.float32)
    a_pred = jnp.concatenate([ashp[:, :, 0], aexp[:, :, 0], ones], axis=1)  # (N, F)
    a_gt = jnp.concatenate([ashpg[:, :, 0], aexpg[:, :, 0], ones], axis=1)

    A2p = jnp.einsum('ncj,nf->ncjf', p, a_pred).reshape(N, 3, 3 * F)
    A2g = jnp.einsum('ncj,nf->ncjf', pg, a_gt).reshape(N, 3, 3 * F)
    off_d = (off - offg).reshape(N, 3, 1)
    A_diff = jnp.concatenate([A2p - A2g, off_d], axis=2)                    # (N, 3, Kc)
    A_diff = jnp.pad(A_diff, ((0, 0), (0, 0), (0, Kpad - Kc))).astype(jnp.float32)

    # --- batch tiling: TB samples per grid step (padded rows are all-zero -> 0 loss)
    TB = min(512, max(8, ((N + 7) // 8) * 8))
    nb = (N + TB - 1) // TB
    Npad = nb * TB
    A_diff = jnp.pad(A_diff, ((0, Npad - N), (0, 0), (0, 0)))
    A_diff = A_diff.reshape(nb, TB * 3, Kpad)

    partials = pl.pallas_call(
        wing_kernel,
        out_shape=jax.ShapeDtypeStruct((nb, 8, Vpad), jnp.float32),
        grid_spec=pltpu.PrefetchScalarGridSpec(
            num_scalar_prefetch=0,
            grid=(nb,),
            in_specs=[
                pl.BlockSpec((1, TB * 3, Kpad), lambda i: (i, 0, 0)),   # fused A rows
                pl.BlockSpec((Kpad, Vpad), lambda i: (0, 0)),           # resident basis
            ],
            out_specs=pl.BlockSpec((1, 8, Vpad), lambda i: (i, 0, 0)),  # per-tile partials
        ),
        compiler_params=pltpu.CompilerParams(
            dimension_semantics=("parallel",)),   # megacore-shardable on v7x
    )(A_diff, B2)

    inv_count = 1.0 / float(N * 3 * V)
    return jnp.sum(partials) * inv_count


# ------------------------------ JAX glue -------------------------------------

def parse_param_batch(param):
    N = param.shape[0]
    p_ = param[:, :12].reshape(N, 3, 4)
    p = p_[:, :, :3]
    offset = p_[:, :, 3:4]
    alpha_shp = param[:, 12:52].reshape(N, -1, 1)
    alpha_exp = param[:, 52:].reshape(N, -1, 1)
    return p, offset, alpha_shp, alpha_exp


def prepare_resample(input_, target_, u, w_shp, w_exp, param_mean, param_std,
                     keypoints, resample_key, resample_num=132):
    param = input_ * param_std + param_mean
    param_gt = target_ * param_std + param_mean
    p, offset, ashp, aexp = parse_param_batch(param)
    pg, offsetg, ashpg, aexpg = parse_param_batch(param_gt)

    # offset[:, -1] = offsetg[:, -1]
    offset = offset.at[:, -1].set(offsetg[:, -1])

    # deterministic replacement for torch.randperm (glue, outside the kernel)
    w_shp_length = w_shp.shape[0] // 3
    index = jax.random.permutation(resample_key, w_shp_length)[:resample_num]
    index = index.reshape(-1, 1)
    kp_resample = jnp.concatenate([3 * index, 3 * index + 1, 3 * index + 2],
                                  axis=1).reshape(-1)
    kp_mix = jnp.concatenate([keypoints, kp_resample])

    u_base = u[kp_mix]            # (K, 1)
    w_shp_base = w_shp[kp_mix]    # (K, n_shp)
    w_exp_base = w_exp[kp_mix]    # (K, n_exp)

    return (p, pg, offset, offsetg, ashp, ashpg, aexp, aexpg,
            u_base, w_shp_base, w_exp_base)


def wing_loss_reference(p, pg, off, offg, ashp, ashpg, aexp, aexpg,
                        u_base, w_shp_base, w_exp_base):
    """Pure-JAX mirror of the PyTorch forward (for verification)."""
    N = p.shape[0]

    def recon(P, OFF, A_SHP, A_EXP):
        t = u_base + jnp.matmul(w_shp_base, A_SHP) + jnp.matmul(w_exp_base, A_EXP)
        t = t.reshape(N, -1, 3).transpose(0, 2, 1)   # (N, 3, V)
        return jnp.matmul(P, t) + OFF

    vertex = recon(p, off, ashp, aexp)
    gt_vertex = recon(pg, offg, ashpg, aexpg)
    x = vertex - gt_vertex
    ax = jnp.abs(x)
    return jnp.mean(jnp.where(ax < W_WING,
                              W_WING * jnp.log(1.0 + ax / EPSILON),
                              ax - C_WING))


# --------------------------------- main ---------------------------------------

if __name__ == "__main__":
    key = jax.random.PRNGKey(0)
    ks = jax.random.split(key, 8)

    N = 2           # batch
    L = 256         # number of synthetic model vertices  -> w_shp_length
    n_shp, n_exp = 40, 10
    param_dim = 62  # 12 pose + 40 shape + 10 expression

    # deterministic synthetic 3DMM parameters (module buffers)
    u = jax.random.normal(ks[0], (3 * L, 1), jnp.float32) * 0.5
    w_shp = jax.random.normal(ks[1], (3 * L, n_shp), jnp.float32) * 0.05
    w_exp = jax.random.normal(ks[2], (3 * L, n_exp), jnp.float32) * 0.05
    param_mean = jax.random.normal(ks[3], (param_dim,), jnp.float32) * 0.1
    param_std = jnp.abs(jax.random.normal(ks[4], (param_dim,), jnp.float32)) * 0.5 + 0.5

    # 68 synthetic landmark vertices -> 204 flat indices ([3k, 3k+1, 3k+2] triples)
    kp_vert = jnp.arange(68, dtype=jnp.int32) * 3
    keypoints = jnp.stack([3 * kp_vert, 3 * kp_vert + 1, 3 * kp_vert + 2],
                          axis=1).reshape(-1)

    inp = jax.random.normal(ks[5], (N, param_dim), jnp.float32)
    tgt = jax.random.normal(ks[6], (N, param_dim), jnp.float32)
    resample_key = ks[7]

    parts = prepare_resample(inp, tgt, u, w_shp, w_exp, param_mean, param_std,
                             keypoints, resample_key)

    loss = wing_loss_pallas(*parts)
    loss = jax.block_until_ready(loss)

    loss_ref = wing_loss_reference(*parts)
    assert jnp.allclose(loss, loss_ref, rtol=2e-3, atol=1e-4), (loss, loss_ref)

    print("KERNEL_OK")
</pallas_src>

<mosaic_0001>
module attributes {stable_mosaic.version = 11 : i64} {
  func.func @wing_kernel(%arg0: i32, %arg1: memref<1x24x160xf32, #tpu.memory_space<vmem>>, %arg2: memref<160x256xf32, #tpu.memory_space<vmem>>, %arg3: memref<1x8x256xf32, #tpu.memory_space<vmem>>) attributes {dimension_semantics = [#tpu.dimension_semantics<parallel>], iteration_bounds = array<i64: 1>, scalar_prefetch = 0 : i64, scratch_operands = 0 : i64, tpu.core_type = #tpu.core_type<tc>, window_params = [{transform_indices = @transform_0, window_bounds = array<i64: 1, 24, 160>}, {pipeline_mode = #tpu.pipeline_mode<synchronous>, transform_indices = @transform_1, window_bounds = array<i64: 160, 256>}, {transform_indices = @transform_2, window_bounds = array<i64: 1, 8, 256>}]} {
    %c0 = arith.constant 0 : index
    %c0_0 = arith.constant 0 : index
    %c0_1 = arith.constant 0 : index
    %0 = vector.load %arg1[%c0, %c0_0, %c0_1] : memref<1x24x160xf32, #tpu.memory_space<vmem>>, vector<1x24x160xf32>
    %1 = vector.shape_cast %0 : vector<1x24x160xf32> to vector<24x160xf32>
    %c0_2 = arith.constant 0 : index
    %c0_3 = arith.constant 0 : index
    %2 = vector.load %arg2[%c0_2, %c0_3] : memref<160x256xf32, #tpu.memory_space<vmem>>, vector<160x256xf32>
    %cst = arith.constant dense<0.000000e+00> : vector<24x256xf32>
    %3 = tpu.matmul %1, %2, %cst {dimension_numbers = #tpu.dot_dimension_numbers<[1], [0], [0], [1], [0, 0, 1, 1], [], []>} : vector<24x160xf32>, vector<160x256xf32>, vector<24x256xf32> -> vector<24x256xf32>
    %4 = math.absf %3 : vector<24x256xf32>
    %cst_4 = arith.constant 1.000000e+01 : f32
    %5 = vector.broadcast %cst_4 : f32 to vector<24x256xf32>
    %6 = arith.cmpf olt, %4, %5 : vector<24x256xf32>
    %cst_5 = arith.constant 5.000000e-01 : f32
    %7 = vector.broadcast %cst_5 : f32 to vector<24x256xf32>
    %8 = arith.mulf %4, %7 : vector<24x256xf32>
    %cst_6 = arith.constant 1.000000e+00 : f32
    %9 = vector.broadcast %cst_6 : f32 to vector<24x256xf32>
    %10 = arith.addf %9, %8 : vector<24x256xf32>
    %11 = math.log %10 : vector<24x256xf32>
    %cst_7 = arith.constant 1.000000e+01 : f32
    %12 = vector.broadcast %cst_7 : f32 to vector<24x256xf32>
    %13 = arith.mulf %12, %11 : vector<24x256xf32>
    %cst_8 = arith.constant -7.9175949 : f32
    %14 = vector.broadcast %cst_8 : f32 to vector<24x256xf32>
    %15 = arith.subf %4, %14 : vector<24x256xf32>
    %16 = arith.select %6, %13, %15 : vector<24x256xi1>, vector<24x256xf32>
    %17 = vector.shape_cast %16 : vector<24x256xf32> to vector<3x8x256xf32>
    %cst_9 = arith.constant dense<0.000000e+00> : vector<8x256xf32>
    %18 = vector.multi_reduction <add>, %17, %cst_9 [0] : vector<3x8x256xf32> to vector<8x256xf32>
    %c0_10 = arith.constant 0 : index
    %c0_11 = arith.constant 0 : index
    %c0_12 = arith.constant 0 : index
    %19 = vector.load %arg3[%c0_10, %c0_11, %c0_12] : memref<1x8x256xf32, #tpu.memory_space<vmem>>, vector<1x8x256xf32>
    %20 = vector.shape_cast %19 : vector<1x8x256xf32> to vector<8x256xf32>
    %21 = vector.shape_cast %18 : vector<8x256xf32> to vector<1x8x256xf32>
    tpu.vector_store %arg3[%c0_10, %c0_11, %c0_12], %21 {strides = array<i32>} : memref<1x8x256xf32, #tpu.memory_space<vmem>>, vector<1x8x256xf32>,
    return
  }
  func.func @transform_0(%arg0: i32) -> (i32, i32, i32) {
    %c0_i32 = arith.constant 0 : i32
    %c0_i32_0 = arith.constant 0 : i32
    %c0_i32_1 = arith.constant 0 : i32
    return %arg0, %c0_i32, %c0_i32_0 : i32, i32, i32
  }
  func.func @transform_1(%arg0: i32) -> (i32, i32) {
    %c0_i32 = arith.constant 0 : i32
    %c0_i32_0 = arith.constant 0 : i32
    %c0_i32_1 = arith.constant 0 : i32
    return %c0_i32, %c0_i32_0 : i32, i32
  }
  func.func @transform_2(%arg0: i32) -> (i32, i32, i32) {
    %c0_i32 = arith.constant 0 : i32
    %c0_i32_0 = arith.constant 0 : i32
    %c0_i32_1 = arith.constant 0 : i32
    return %arg0, %c0_i32, %c0_i32_0 : i32, i32, i32
  }
}

</mosaic_0001>

<llo_original>
// kernel: tpu_custom_call.1
$region0: #{tpu_custom_call.1}
  #allocation0 [shape = 'u32[]', space=smem, size = 0x4, offset = 0x4, fixed_abs, tag = 'smem constant byte address 0x4 - core index']
  #allocation1 [shape = 'u32[144,128]{1,0:T(1,128)}', space=vmem, size = 0x12000, scoped, tag = 'internal scratch']
  %s0 = inlined_call_operand.hbm [shape: f32[1,24,160], index: 0, kind: input, shape index: {}]
  %s1 = inlined_call_operand.hbm [shape: f32[160,256], index: 1, kind: input, shape index: {}]
  %s2 = inlined_call_operand.hbm [shape: f32[1,8,256], index: 2, kind: output, shape index: {}]
  %s3 = sld [smem:[#allocation0]]
  $region26: #{tpu_custom_call.1} parent=0
    _
  %s5 = ssub.s32 1, %s3
  %s6 = scalar_select 0, %s5, %s3
  $region1: #{tpu_custom_call.1} parent=0
    #allocation2 [shape = 'u8[24576]{0}', space=vmem, size = 0x6000, scoped, tag = 'input window, operand 0, single buffered']
    #allocation3 [shape = 's32[1]{0}', space=sflag, size = 0x4, scoped, tag = 'scoped memory for tpu_custom_call.1']
    #allocation4 [shape = 's32[1]{0}', space=sflag, size = 0x4, scoped, tag = 'scoped memory for tpu_custom_call.1']
    #allocation5 [shape = 'u8[163840]{0}', space=vmem, size = 0x28000, scoped, tag = 'input window, operand 1, single buffered']
    #allocation6 [shape = 's32[1]{0}', space=sflag, size = 0x4, scoped, tag = 'scoped memory for tpu_custom_call.1']
    #allocation7 [shape = 'u8[8192]{0}', space=vmem, size = 0x2000, scoped, tag = 'output window, operand 0, single buffered']
    %7 = vsyncpa [#allocation3], 0
    %8 = vsyncpa [#allocation6], 0
    %9 = vsyncpa [#allocation4], 0
    // Predicated region
    $region2: #{tpu_custom_call.1} parent=1 // pred_check
      _
    $region3: #{tpu_custom_call.1} parent=1 // pred_check_branch
      %11 = sbr.rel (0) target = $region5
    $region4: #{tpu_custom_call.1} parent=1 // pred_region
      %s13 = ssub.s32 768, 768
      %14 = vsyncadd [#allocation3], %s13
      %s15 = sshll.u32 [#allocation2], 4
      %s16 = int_to_ptr.vmem [resolvable:$true] %s15
      %21 = dma.hbm_to_vmem [thread:$0]  %s0, 768, %s16, [#allocation3], 256, 256, 16
    $region5: #{tpu_custom_call.1} parent=1 // pred_fallthru
      _
    // Predicated region
    $region6: #{tpu_custom_call.1} parent=1 // pred_check
      _
    $region7: #{tpu_custom_call.1} parent=1 // pred_check_branch
      %23 = sbr.rel (0) target = $region9
    $region8: #{tpu_custom_call.1} parent=1 // pred_region
      %s25 = ssub.s32 5120, 5120
      %26 = vsyncadd [#allocation6], %s25
      %s27 = sshll.u32 [#allocation5], 4
      %s28 = int_to_ptr.vmem [resolvable:$true] %s27
      %33 = dma.hbm_to_vmem [thread:$0]  %s1, 5120, %s28, [#allocation6], 256, 256, 16
    $region9: #{tpu_custom_call.1} parent=1 // pred_fallthru
      _
    // Predicated region
    $region10: #{tpu_custom_call.1} parent=1 // pred_check
      _
    $region11: #{tpu_custom_call.1} parent=1 // pred_check_branch
      %35 = sbr.rel (0) target = $region13
    $region12: #{tpu_custom_call.1} parent=1 // pred_region
      %36 = dma.done [#allocation3], 768
    $region13: #{tpu_custom_call.1} parent=1 // pred_fallthru
      _
    // Predicated region
    $region14: #{tpu_custom_call.1} parent=1 // pred_check
      _
    $region15: #{tpu_custom_call.1} parent=1 // pred_check_branch
      %38 = sbr.rel (0) target = $region17
    $region16: #{tpu_custom_call.1} parent=1 // pred_region
      %39 = dma.done [#allocation6], 5120
    $region17: #{tpu_custom_call.1} parent=1 // pred_fallthru
      _
    %v40 = vld [vmem:[#allocation2] sm:$0xff]
    %v41 = vld [vmem:[#allocation2 + $0x8] sm:$0xff]
    %v42 = vld [vmem:[#allocation2 + $0x10] sm:$0xff]
    %v43 = vld [vmem:[#allocation2 + $0x18] sm:$0xff]
    %v44 = vld [vmem:[#allocation2 + $0x20] sm:$0xff]
    %v45 = vld [vmem:[#allocation2 + $0x28] sm:$0xff]
    %v46 = vld [vmem:[#allocation5] sm:$0xff]
    %v47 = vld [vmem:[#allocation5 + $0x8] sm:$0xff]
    %v48 = vld [vmem:[#allocation5 + $0x10] sm:$0xff]
    %v49 = vld [vmem:[#allocation5 + $0x18] sm:$0xff]
    %v50 = vld [vmem:[#allocation5 + $0x20] sm:$0xff]
    %v51 = vld [vmem:[#allocation5 + $0x28] sm:$0xff]
    %v52 = vld [vmem:[#allocation5 + $0x30] sm:$0xff]
    %v53 = vld [vmem:[#allocation5 + $0x38] sm:$0xff]
    %v54 = vld [vmem:[#allocation5 + $0x40] sm:$0xff]
    %v55 = vld [vmem:[#allocation5 + $0x48] sm:$0xff]
    %v56 = vld [vmem:[#allocation5 + $0x50] sm:$0xff]
    %v57 = vld [vmem:[#allocation5 + $0x58] sm:$0xff]
    %v58 = vld [vmem:[#allocation5 + $0x60] sm:$0xff]
    %v59 = vld [vmem:[#allocation5 + $0x68] sm:$0xff]
    %v60 = vld [vmem:[#allocation5 + $0x70] sm:$0xff]
    %v61 = vld [vmem:[#allocation5 + $0x78] sm:$0xff]
    %v62 = vld [vmem:[#allocation5 + $0x80] sm:$0xff]
    %v63 = vld [vmem:[#allocation5 + $0x88] sm:$0xff]
    %v64 = vld [vmem:[#allocation5 + $0x90] sm:$0xff]
    %v65 = vld [vmem:[#allocation5 + $0x98] sm:$0xff]
    %v66 = vld [vmem:[#allocation5 + $0xa0] sm:$0xff]
    %v67 = vld [vmem:[#allocation5 + $0xa8] sm:$0xff]
    %v68 = vld [vmem:[#allocation5 + $0xb0] sm:$0xff]
    %v69 = vld [vmem:[#allocation5 + $0xb8] sm:$0xff]
    %v70 = vld [vmem:[#allocation5 + $0xc0] sm:$0xff]
    %v71 = vld [vmem:[#allocation5 + $0xc8] sm:$0xff]
    %v72 = vld [vmem:[#allocation5 + $0xd0] sm:$0xff]
    %v73 = vld [vmem:[#allocation5 + $0xd8] sm:$0xff]
    %v74 = vld [vmem:[#allocation5 + $0xe0] sm:$0xff]
    %v75 = vld [vmem:[#allocation5 + $0xe8] sm:$0xff]
    %v76 = vld [vmem:[#allocation5 + $0xf0] sm:$0xff]
    %v77 = vld [vmem:[#allocation5 + $0xf8] sm:$0xff]
    %v78 = vld [vmem:[#allocation5 + $0x100] sm:$0xff]
    %v79 = vld [vmem:[#allocation5 + $0x108] sm:$0xff]
    %v80 = vld [vmem:[#allocation5 + $0x110] sm:$0xff]
    %v81 = vld [vmem:[#allocation5 + $0x118] sm:$0xff]
    %v82 = vld [vmem:[#allocation5 + $0x120] sm:$0xff]
    %v83 = vld [vmem:[#allocation5 + $0x128] sm:$0xff]
    %v84 = vld [vmem:[#allocation5 + $0x130] sm:$0xff]
    %v85 = vld [vmem:[#allocation5 + $0x138] sm:$0xff]
    %vm86 = vcmask 261120
    %v88 = vsel %vm86, %v41, 0
    %v91 = vsel %vm86, %v43, 0
    %v94 = vsel %vm86, %v45, 0
    %96 = vmatprep.subr.mxu0 %v47
    %97 = vmatpush1.msra.mxu0 %v46
    %98 = vmatprep.subr.mxu0 %v49
    %99 = vmatpush1.msra.mxu0 %v48
    %100 = vmatprep.subr.mxu0 %v51
    %101 = vmatpush1.msra.mxu0 %v50
    %102 = vmatprep.subr.mxu0 %v53
    %103 = vmatpush1.msra.mxu0 %v52
    %104 = vmatprep.subr.mxu0 %v55
    %105 = vmatpush1.msra.mxu0 %v54
    %106 = vmatprep.subr.mxu0 %v57
    %107 = vmatpush1.msra.mxu0 %v56
    %108 = vmatprep.subr.mxu0 %v59
    %109 = vmatpush1.msra.mxu0 %v58
    %110 = vmatprep.subr.mxu0 %v61
    %111 = vmatpush1.msra.mxu0 %v60
    %112 = vmatprep.subr.mxu0 %v63
    %113 = vmatpush1.msra.mxu0 %v62
    %114 = vmatprep.subr.mxu0 %v65
    %115 = vmatpush1.msra.mxu0 %v64
    %116 = vmatprep.subr.mxu0 %v67
    %117 = vmatpush1.msra.mxu0 %v66
    %118 = vmatprep.subr.mxu0 %v69
    %119 = vmatpush1.msra.mxu0 %v68
    %120 = vmatprep.subr.mxu0 %v71
    %121 = vmatpush1.msra.mxu0 %v70
    %122 = vmatprep.subr.mxu0 %v73
    %123 = vmatpush1.msra.mxu0 %v72
    %124 = vmatprep.subr.mxu0 %v75
    %125 = vmatpush1.msra.mxu0 %v74
    %126 = vmatprep.subr.mxu0 %v77
    %127 = vmatpush1.msra.mxu0 %v76
    %128 = vmatprep.subr.mxu0 %v79
    %129 = vmatpush1.msra.mxu0 %v78
    %130 = vmatprep.subr.mxu0 %v81
    %131 = vmatpush1.msra.mxu0 %v80
    %132 = vmatprep.subr.mxu0 %v83
    %133 = vmatpush1.msra.mxu0 %v82
    %134 = vmatprep.subr.mxu0 %v85
    %135 = vmatpush1.msra.mxu0 %v84
    %136 = vmatprep.subr.mxu0 0.0
    %137 = vmatpush1.msra.mxu0 0.0
    %138 = vmatprep.subr.mxu0 0.0
    %139 = vmatpush1.msra.mxu0 0.0
    %140 = vmatprep.subr.mxu0 0.0
    %141 = vmatpush1.msra.mxu0 0.0
    %142 = vmatprep.subr.mxu0 0.0
    %143 = vmatpush1.msra.mxu0 0.0
    %144 = vmatprep.subr.mxu0 0.0
    %145 = vmatpush1.msra.mxu0 0.0
    %146 = vmatprep.subr.mxu0 0.0
    %147 = vmatpush1.msra.mxu0 0.0
    %148 = vmatprep.subr.mxu0 0.0
    %149 = vmatpush1.msra.mxu0 0.0
    %150 = vmatprep.subr.mxu0 0.0
    %151 = vmatpush1.msra.mxu0 0.0
    %152 = vmatprep.subr.mxu0 0.0
    %153 = vmatpush1.msra.mxu0 0.0
    %154 = vmatprep.subr.mxu0 0.0
    %155 = vmatpush1.msra.mxu0 0.0
    %156 = vmatprep.subr.mxu0 0.0
    %157 = vmatpush1.msra.mxu0 0.0
    %158 = vmatprep.subr.mxu0 0.0
    %159 = vmatpush1.msra.mxu0 0.0
    %160 = vmatprep.mubr.f32.mxu0 %v88
    %161 = vmatmul.mubr.f32.gmra.mrb[0].mxu0 %v40
    %v162 = vpop.f32.mrb[0].mxu0
    %v163 = vadd.f32 0.0, %v162
    %v164 = vpop.f32.mrb[0].mxu0
    %v165 = vadd.f32 0.0, %v164
    %166 = vmatprep.mubr.f32.mxu0 %v91
    %167 = vmatmul.mubr.f32.gmra.mrb[0].mxu0 %v42
    %v168 = vpop.f32.mrb[0].mxu0
    %v169 = vadd.f32 0.0, %v168
    %v170 = vpop.f32.mrb[0].mxu0
    %v171 = vadd.f32 0.0, %v170
    %172 = vmatprep.mubr.f32.mxu0 %v94
    %173 = vmatmul.mubr.f32.gmra.mrb[0].mxu0 %v44
    %v174 = vpop.f32.mrb[0].mxu0
    %v175 = vadd.f32 0.0, %v174
    %v176 = vpop.f32.mrb[0].mxu0
    %v177 = vadd.f32 0.0, %v176
    %178 = vdwg.mxu0
    %v179 = vand.u32 2147483647, %v163
    %v180 = vand.u32 2147483647, %v165
    %v181 = vand.u32 2147483647, %v169
    %v182 = vand.u32 2147483647, %v171
    %v183 = vand.u32 2147483647, %v175
    %v184 = vand.u32 2147483647, %v177
    %vm185 = vcmp.lt.f32.partialorder %v179, 10.0
    %vm186 = vcmp.lt.f32.partialorder %v180, 10.0
    %vm187 = vcmp.lt.f32.partialorder %v181, 10.0
    %vm188 = vcmp.lt.f32.partialorder %v182, 10.0
    %vm189 = vcmp.lt.f32.partialorder %v183, 10.0
    %vm190 = vcmp.lt.f32.partialorder %v184, 10.0
    %v191 = vmul.f32 %v179, 0.5
    %v192 = vmul.f32 %v180, 0.5
    %v193 = vmul.f32 %v181, 0.5
    %v194 = vmul.f32 %v182, 0.5
    %v195 = vmul.f32 %v183, 0.5
    %v196 = vmul.f32 %v184, 0.5
    %v197 = vadd.f32 %v191, 1.0
    %v198 = vadd.f32 %v192, 1.0
    %v199 = vadd.f32 %v193, 1.0
    %v200 = vadd.f32 %v194, 1.0
    %v201 = vadd.f32 %v195, 1.0
    %v202 = vadd.f32 %v196, 1.0
    %v203 = vlog2.pop %v197
    %v204 = vmul.f32 %v203, 0.6931472
    %v205 = vlog2.pop %v198
    %v206 = vmul.f32 %v205, 0.6931472
    %v207 = vlog2.pop %v199
    %v208 = vmul.f32 %v207, 0.6931472
    %v209 = vlog2.pop %v200
    %v210 = vmul.f32 %v209, 0.6931472
    %v211 = vlog2.pop %v201
    %v212 = vmul.f32 %v211, 0.6931472
    %v213 = vlog2.pop %v202
    %v214 = vmul.f32 %v213, 0.6931472
    %v215 = vmul.f32 %v204, 10.0
    %v216 = vmul.f32 %v206, 10.0
    %v217 = vmul.f32 %v208, 10.0
    %v218 = vmul.f32 %v210, 10.0
    %v219 = vmul.f32 %v212, 10.0
    %v220 = vmul.f32 %v214, 10.0
    %v221 = vsub.f32 %v179, -7.917595
    %v222 = vsub.f32 %v180, -7.917595
    %v223 = vsub.f32 %v181, -7.917595
    %v224 = vsub.f32 %v182, -7.917595
    %v225 = vsub.f32 %v183, -7.917595
    %v226 = vsub.f32 %v184, -7.917595
    %v227 = vsel %vm185, %v215, %v221
    %v228 = vsel %vm186, %v216, %v222
    %v229 = vsel %vm187, %v217, %v223
    %v230 = vsel %vm188, %v218, %v224
    %v231 = vsel %vm189, %v219, %v225
    %v232 = vsel %vm190, %v220, %v226
    %v233 = vadd.f32 %v227, %v229
    %v234 = vadd.f32 %v233, %v231
    %v235 = vadd.f32 %v228, %v230
    %v236 = vadd.f32 %v235, %v232
    %237 = vst [vmem:[#allocation7] sm:$0xff] %v234
    %238 = vst [vmem:[#allocation7 + $0x8] sm:$0xff] %v236
    // Predicated region
    $region18: #{tpu_custom_call.1} parent=1 // pred_check
      _
    $region19: #{tpu_custom_call.1} parent=1 // pred_check_branch
      %240 = sbr.rel (0) target = $region21
    $region20: #{tpu_custom_call.1} parent=1 // pred_region
      %s242 = ssub.s32 256, 256
      %243 = vsyncadd [#allocation4], %s242
      %s245 = sshll.u32 [#allocation7], 4
      %s246 = int_to_ptr.vmem [resolvable:$true] %s245
      %248 = dma.vmem_to_hbm [thread:$0]  %s246, 256, %s2, [#allocation4]
    $region21: #{tpu_custom_call.1} parent=1 // pred_fallthru
      _
    // Predicated region
    $region22: #{tpu_custom_call.1} parent=1 // pred_check
      _
    $region23: #{tpu_custom_call.1} parent=1 // pred_check_branch
      %250 = sbr.rel (0) target = $region25
    $region24: #{tpu_custom_call.1} parent=1 // pred_region
      %251 = dma.done [#allocation4], 256
    $region25: #{tpu_custom_call.1} parent=1 // pred_fallthru
      _
    %252 = vsyncpa [#allocation3], 1
    %253 = vsyncpa [#allocation6], 1
    %254 = vsyncpa [#allocation4], 1

</llo_original>
